<compile_context>
chip_gen: v7x
topology: tpu7x:2x2x1
jax: 0.10.0
libtpu: 0.0.40
codegen_flags: <defaults>
</compile_context>

<pallas_src>
import functools
import math

import jax
import jax.numpy as jnp
from jax.experimental import pallas as pl
from jax.experimental.pallas import tpu as pltpu

_LANE = 128
_PAD_VALUE = -1e30   # padded class lanes -> exp(pad/tau - max) == 0 exactly
_TINY = 1e-37        # clamps softmax denominators that are identically 0 on padded lanes


def _self_classifier_kernel(
    const_ref, x_ref, o_ref, t_sum, l_sum, scal,
    *, row_tau, col_tau, eps, inv_b, n_views,
):
    h = pl.program_id(0)
    v = pl.program_id(1)                  # grid step; original view = (v + 2) % n_views

    @pl.when(v == 0)
    def _init():
        t_sum[...] = jnp.zeros_like(t_sum)
        l_sum[...] = jnp.zeros_like(l_sum)
        scal[0] = jnp.float32(0.0)        # s_tail = <sum_{i>=2} T_i, sum_{j>=2} L_j>
        scal[1] = jnp.float32(0.0)        # s_head = sum_{i<2} <T_i, L_i>

    # Views >= 2 are processed first (index_map reorder).  Just before the first
    # head view (original view 0) is accumulated, t_sum / l_sum hold exactly the
    # tail sums -> snapshot their cross term as a scalar (off the last step, so
    # the big reduction overlaps the remaining DMAs).
    @pl.when(v == n_views - 2)
    def _snapshot_tail():
        scal[0] = jnp.sum(t_sum[...] * l_sum[...])

    x = x_ref[0, 0].astype(jnp.float32)   # (B, Cp), cast in VMEM (input DMA'd native)

    # Globally-stabilised exponentials; the stabiliser cancels in every
    # normalisation below.  Padded lanes hold _PAD_VALUE so they exp() to 0.
    xs_t = x * (1.0 / col_tau)
    e_t = jnp.exp(xs_t - jnp.max(xs_t))
    if row_tau == col_tau:                # static: one exp shared by both softmaxes
        e_p = e_t
    else:
        xs_p = x * (1.0 / row_tau)
        e_p = jnp.exp(xs_p - jnp.max(xs_p))

    # target: softmax over the batch axis, then L1-normalise each row.
    # (reciprocal of the reduced vector + broadcast multiply; abs dropped: e >= 0)
    t = e_t * pl.reciprocal(jnp.maximum(jnp.sum(e_t, axis=0, keepdims=True), _TINY))
    t = t * pl.reciprocal(jnp.maximum(jnp.sum(t, axis=1, keepdims=True), eps))

    # prediction: softmax over the class axis, L1-normalise columns, then log.
    p = e_p * pl.reciprocal(jnp.maximum(jnp.sum(e_p, axis=1, keepdims=True), _TINY))
    p = p * pl.reciprocal(jnp.maximum(jnp.sum(p, axis=0, keepdims=True), eps))
    lgp = jnp.log(const_ref[h] * p + eps)

    t_sum[...] += t
    l_sum[...] += lgp

    # Head views (original index < 2) are the last two grid steps: accumulate
    # their diagonal <T_i, L_i> as a scalar.
    @pl.when(v >= n_views - 2)
    def _head_diag():
        scal[1] = scal[1] + jnp.sum(t * lgp)

    @pl.when(v == n_views - 1)
    def _finalize():
        s_all = jnp.sum(t_sum[...] * l_sum[...])
        # sum over valid (i, j) pairs of <T_i, L_j> =
        #   <sum T, sum L> - <sum_tail T, sum_tail L> - sum_{i<2} <T_i, L_i>
        loss = -(s_all - scal[0] - scal[1]) * inv_b
        o_ref[0] = jnp.full((8, _LANE), loss, jnp.float32)


def _num_loss_terms(num_views):
    return sum(
        1
        for j in range(num_views)
        for i in range(num_views)
        if i != j and not (i >= 2 and j >= 2)
    )


def self_classifier_loss(out, *, row_tau=0.1, col_tau=0.1, eps=1e-8):
    """out: list of classification heads; each head is either a list of V (B, C)
    arrays (like the PyTorch module's input) or a stacked (V, B, C) array."""
    heads = [
        cls_out if hasattr(cls_out, "shape") else jnp.stack(list(cls_out), axis=0)
        for cls_out in out
    ]
    V, B = heads[0].shape[0], heads[0].shape[1]
    for x in heads:
        assert x.shape[0] == V and x.shape[1] == B, "all heads must share (V, B)"

    # Lane-dense padding of the class axis to a shared multiple of 128.  Padded
    # lanes hold _PAD_VALUE so the kernel needs no masks (they exp() to 0).
    c_max = max(x.shape[2] for x in heads)
    cp = max(_LANE, ((c_max + _LANE - 1) // _LANE) * _LANE)
    consts, padded = [], []
    for x in heads:
        C = x.shape[2]
        consts.append(float(B) / float(C))            # const = B / C (real C)
        if C < cp:
            x = jnp.concatenate(
                [x, jnp.full((V, B, cp - C), _PAD_VALUE, x.dtype)], axis=2)
        padded.append(x)
    # Keep the native dtype (no f32 upcast before the DMA); the kernel casts in VMEM.
    x_all = jnp.stack(padded, axis=0)                 # (H, V, B, Cp)
    consts = jnp.asarray(consts, jnp.float32)         # (H,)
    H = x_all.shape[0]

    kernel = functools.partial(
        _self_classifier_kernel,
        row_tau=float(row_tau), col_tau=float(col_tau), eps=float(eps),
        inv_b=1.0 / float(B), n_views=V)

    # Real VMEM footprint: 2 f32 accumulators + double-buffered input view tile.
    vmem_needed = 2 * B * cp * 4 + 2 * B * cp * x_all.dtype.itemsize + (2 << 20)
    cp_kwargs = dict(dimension_semantics=("parallel", "arbitrary"))
    if vmem_needed > (32 << 20):
        cp_kwargs["vmem_limit_bytes"] = int(vmem_needed)

    out_pad = pl.pallas_call(
        kernel,
        out_shape=jax.ShapeDtypeStruct((H, 8, _LANE), jnp.float32),
        grid=(H, V),
        in_specs=[
            pl.BlockSpec(memory_space=pltpu.MemorySpace.SMEM),      # per-head const B/C
            pl.BlockSpec((1, 1, B, cp),
                         lambda h, v: (h, (v + 2) % V, 0, 0)),      # tail views first
        ],
        out_specs=pl.BlockSpec((1, 8, _LANE), lambda h, v: (h, 0, 0)),
        scratch_shapes=[
            pltpu.VMEM((B, cp), jnp.float32),     # sum of targets
            pltpu.VMEM((B, cp), jnp.float32),     # sum of log-predictions
            pltpu.SMEM((2,), jnp.float32),        # [s_tail, s_head_diag]
        ],
        compiler_params=pltpu.CompilerParams(**cp_kwargs),
    )(consts, x_all)

    head_losses = out_pad[:, 0, 0]                    # (H,)
    num_terms = H * _num_loss_terms(V)
    return jnp.sum(head_losses) / num_terms


def _reference_loss(out, row_tau, col_tau, eps):
    # Pure-JAX mirror of the PyTorch forward (explicit per-pair loops).
    total = jnp.float32(0.0)
    n = 0
    for cls_out in out:
        views = [jnp.asarray(v, jnp.float32) for v in cls_out]
        B, C = views[0].shape
        const = B / C
        targets = []
        for vi in views:
            t = jax.nn.softmax(vi / col_tau, axis=0)
            t = t / jnp.maximum(jnp.sum(jnp.abs(t), axis=1, keepdims=True), eps)
            targets.append(t)
        for j_idx, vj in enumerate(views):
            p = jax.nn.softmax(vj / row_tau, axis=1)
            p = p / jnp.maximum(jnp.sum(jnp.abs(p), axis=0, keepdims=True), eps)
            lgp = jnp.log(const * p + eps)
            for i_idx, ti in enumerate(targets):
                if i_idx == j_idx or (i_idx >= 2 and j_idx >= 2):
                    continue
                total = total + (-jnp.mean(jnp.sum(ti * lgp, axis=1)))
                n += 1
    return total / n


if __name__ == "__main__":
    row_tau, col_tau, eps = 0.1, 0.1, 1e-8
    num_views, batch = 8, 2

    key = jax.random.PRNGKey(0)
    heads = []
    for num_classes in (5, 7):  # two classification heads with different class counts
        key, sub = jax.random.split(key)
        heads.append(
            0.2 * jax.random.normal(sub, (num_views, batch, num_classes), jnp.float32)
        )
    # Mimic the PyTorch input structure: list of heads, each a list of V (B, C) views.
    out = [[h[i] for i in range(num_views)] for h in heads]

    loss = self_classifier_loss(out, row_tau=row_tau, col_tau=col_tau, eps=eps)
    loss = jax.block_until_ready(loss)

    ref = _reference_loss(out, row_tau, col_tau, eps)
    assert math.isfinite(float(loss))
    assert abs(float(loss) - float(ref)) < 2e-4 * max(1.0, abs(float(ref))), (
        float(loss), float(ref))

    print("KERNEL_OK")
</pallas_src>

<mosaic_0001>
module attributes {stable_mosaic.version = 11 : i64} {
  func.func @_self_classifier_kernel(%arg0: i32, %arg1: i32, %arg2: memref<2xf32, #tpu.memory_space<smem>>, %arg3: memref<1x1x2x128xf32, #tpu.memory_space<vmem>>, %arg4: memref<1x8x128xf32, #tpu.memory_space<vmem>>, %arg5: memref<2x128xf32, #tpu.memory_space<vmem>>, %arg6: memref<2x128xf32, #tpu.memory_space<vmem>>, %arg7: memref<2xf32, #tpu.memory_space<smem>>) attributes {dimension_semantics = [#tpu.dimension_semantics<parallel>, #tpu.dimension_semantics<arbitrary>], iteration_bounds = array<i64: 2, 8>, scalar_prefetch = 0 : i64, scratch_operands = 3 : i64, tpu.core_type = #tpu.core_type<tc>, window_params = [{transform_indices = @transform_0, window_bounds = array<i64: 2>}, {transform_indices = @transform_1, window_bounds = array<i64: 1, 1, 2, 128>}, {transform_indices = @transform_2, window_bounds = array<i64: 1, 8, 128>}]} {
    %c0_i32 = arith.constant 0 : i32
    %0 = arith.cmpi eq, %arg1, %c0_i32 : i32
    %1 = arith.extui %0 : i1 to i32
    %c0_i32_0 = arith.constant 0 : i32
    %2 = arith.cmpi ne, %1, %c0_i32_0 : i32
    scf.if %2 {
      %cst_26 = arith.constant 0.000000e+00 : f32
      %64 = vector.broadcast %cst_26 : f32 to vector<2x128xf32>
      %c0_27 = arith.constant 0 : index
      %c0_28 = arith.constant 0 : index
      %65 = vector.load %arg5[%c0_27, %c0_28] : memref<2x128xf32, #tpu.memory_space<vmem>>, vector<2x128xf32>
      tpu.vector_store %arg5[%c0_27, %c0_28], %64 {strides = array<i32>} : memref<2x128xf32, #tpu.memory_space<vmem>>, vector<2x128xf32>,
      %cst_29 = arith.constant 0.000000e+00 : f32
      %66 = vector.broadcast %cst_29 : f32 to vector<2x128xf32>
      %c0_30 = arith.constant 0 : index
      %c0_31 = arith.constant 0 : index
      %67 = vector.load %arg6[%c0_30, %c0_31] : memref<2x128xf32, #tpu.memory_space<vmem>>, vector<2x128xf32>
      tpu.vector_store %arg6[%c0_30, %c0_31], %66 {strides = array<i32>} : memref<2x128xf32, #tpu.memory_space<vmem>>, vector<2x128xf32>,
      %cst_32 = arith.constant 0.000000e+00 : f32
      %c0_33 = arith.constant 0 : index
      %68 = memref.load %arg7[%c0_33] : memref<2xf32, #tpu.memory_space<smem>>
      memref.store %cst_32, %arg7[%c0_33] : memref<2xf32, #tpu.memory_space<smem>>
      %cst_34 = arith.constant 0.000000e+00 : f32
      %c1 = arith.constant 1 : index
      %69 = memref.load %arg7[%c1] : memref<2xf32, #tpu.memory_space<smem>>
      memref.store %cst_34, %arg7[%c1] : memref<2xf32, #tpu.memory_space<smem>>
    } else {
    }
    %c6_i32 = arith.constant 6 : i32
    %3 = arith.cmpi eq, %arg1, %c6_i32 : i32
    %4 = arith.extui %3 : i1 to i32
    %c0_i32_1 = arith.constant 0 : i32
    %5 = arith.cmpi ne, %4, %c0_i32_1 : i32
    scf.if %5 {
      %c0_26 = arith.constant 0 : index
      %c0_27 = arith.constant 0 : index
      %64 = vector.load %arg5[%c0_26, %c0_27] : memref<2x128xf32, #tpu.memory_space<vmem>>, vector<2x128xf32>
      %c0_28 = arith.constant 0 : index
      %c0_29 = arith.constant 0 : index
      %65 = vector.load %arg6[%c0_28, %c0_29] : memref<2x128xf32, #tpu.memory_space<vmem>>, vector<2x128xf32>
      %66 = arith.mulf %64, %65 : vector<2x128xf32>
      %67 = vector.shape_cast %66 : vector<2x128xf32> to vector<1x2x128xf32>
      %cst_30 = arith.constant dense<0.000000e+00> : vector<1xf32>
      %68 = vector.multi_reduction <add>, %67, %cst_30 [1, 2] : vector<1x2x128xf32> to vector<1xf32>
      %69 = vector.shape_cast %68 : vector<1xf32> to vector<1x1x1xf32>
      %70 = vector.extract %69[0, 0, 0] : f32 from vector<1x1x1xf32>
      %c0_31 = arith.constant 0 : index
      %71 = memref.load %arg7[%c0_31] : memref<2xf32, #tpu.memory_space<smem>>
      memref.store %70, %arg7[%c0_31] : memref<2xf32, #tpu.memory_space<smem>>
    } else {
    }
    %c0 = arith.constant 0 : index
    %c0_2 = arith.constant 0 : index
    %c0_3 = arith.constant 0 : index
    %c0_4 = arith.constant 0 : index
    %6 = vector.load %arg3[%c0, %c0_2, %c0_3, %c0_4] : memref<1x1x2x128xf32, #tpu.memory_space<vmem>>, vector<1x1x2x128xf32>
    %7 = vector.shape_cast %6 : vector<1x1x2x128xf32> to vector<2x128xf32>
    %cst = arith.constant 1.000000e+01 : f32
    %8 = vector.broadcast %cst : f32 to vector<2x128xf32>
    %9 = arith.mulf %7, %8 : vector<2x128xf32>
    %10 = vector.shape_cast %9 : vector<2x128xf32> to vector<1x2x128xf32>
    %cst_5 = arith.constant dense<0xFF800000> : vector<1xf32>
    %11 = vector.multi_reduction <maximumf>, %10, %cst_5 [1, 2] : vector<1x2x128xf32> to vector<1xf32>
    %12 = vector.shape_cast %11 : vector<1xf32> to vector<1x1x1xf32>
    %13 = vector.extract %12[0, 0, 0] : f32 from vector<1x1x1xf32>
    %14 = vector.broadcast %13 : f32 to vector<2x128xf32>
    %15 = arith.subf %9, %14 : vector<2x128xf32>
    %16 = math.exp %15 : vector<2x128xf32>
    %cst_6 = arith.constant dense<0.000000e+00> : vector<128xf32>
    %17 = vector.multi_reduction <add>, %16, %cst_6 [0] : vector<2x128xf32> to vector<128xf32>
    %18 = vector.shape_cast %17 : vector<128xf32> to vector<1x128xf32>
    %cst_7 = arith.constant 9.99999991E-38 : f32
    %19 = vector.broadcast %cst_7 : f32 to vector<1x128xf32>
    %20 = arith.maximumf %18, %19 : vector<1x128xf32>
    %21 = tpu.reciprocal %20 : vector<1x128xf32> -> vector<1x128xf32>
    %22 = vector.broadcast %21 : vector<1x128xf32> to vector<2x128xf32>
    %23 = arith.mulf %16, %22 : vector<2x128xf32>
    %cst_8 = arith.constant dense<0.000000e+00> : vector<2xf32>
    %24 = vector.multi_reduction <add>, %23, %cst_8 [1] : vector<2x128xf32> to vector<2xf32>
    %25 = vector.shape_cast %24 : vector<2xf32> to vector<2x1xf32>
    %cst_9 = arith.constant 9.99999993E-9 : f32
    %26 = vector.broadcast %cst_9 : f32 to vector<2x1xf32>
    %27 = arith.maximumf %25, %26 : vector<2x1xf32>
    %28 = tpu.reciprocal %27 : vector<2x1xf32> -> vector<2x1xf32>
    %29 = vector.broadcast %28 : vector<2x1xf32> to vector<2x128xf32>
    %30 = arith.mulf %23, %29 : vector<2x128xf32>
    %cst_10 = arith.constant dense<0.000000e+00> : vector<2xf32>
    %31 = vector.multi_reduction <add>, %16, %cst_10 [1] : vector<2x128xf32> to vector<2xf32>
    %32 = vector.shape_cast %31 : vector<2xf32> to vector<2x1xf32>
    %cst_11 = arith.constant 9.99999991E-38 : f32
    %33 = vector.broadcast %cst_11 : f32 to vector<2x1xf32>
    %34 = arith.maximumf %32, %33 : vector<2x1xf32>
    %35 = tpu.reciprocal %34 : vector<2x1xf32> -> vector<2x1xf32>
    %36 = vector.broadcast %35 : vector<2x1xf32> to vector<2x128xf32>
    %37 = arith.mulf %16, %36 : vector<2x128xf32>
    %cst_12 = arith.constant dense<0.000000e+00> : vector<128xf32>
    %38 = vector.multi_reduction <add>, %37, %cst_12 [0] : vector<2x128xf32> to vector<128xf32>
    %39 = vector.shape_cast %38 : vector<128xf32> to vector<1x128xf32>
    %cst_13 = arith.constant 9.99999993E-9 : f32
    %40 = vector.broadcast %cst_13 : f32 to vector<1x128xf32>
    %41 = arith.maximumf %39, %40 : vector<1x128xf32>
    %42 = tpu.reciprocal %41 : vector<1x128xf32> -> vector<1x128xf32>
    %43 = vector.broadcast %42 : vector<1x128xf32> to vector<2x128xf32>
    %44 = arith.mulf %37, %43 : vector<2x128xf32>
    %45 = arith.index_cast %arg0 : i32 to index
    %46 = memref.load %arg2[%45] : memref<2xf32, #tpu.memory_space<smem>>
    %47 = vector.broadcast %46 : f32 to vector<2x128xf32>
    %48 = arith.mulf %47, %44 : vector<2x128xf32>
    %cst_14 = arith.constant 9.99999993E-9 : f32
    %49 = vector.broadcast %cst_14 : f32 to vector<2x128xf32>
    %50 = arith.addf %48, %49 : vector<2x128xf32>
    %51 = math.log %50 : vector<2x128xf32>
    %c0_15 = arith.constant 0 : index
    %c0_16 = arith.constant 0 : index
    %52 = vector.load %arg5[%c0_15, %c0_16] : memref<2x128xf32, #tpu.memory_space<vmem>>, vector<2x128xf32>
    %53 = arith.addf %52, %30 : vector<2x128xf32>
    %c0_17 = arith.constant 0 : index
    %c0_18 = arith.constant 0 : index
    %54 = vector.load %arg5[%c0_17, %c0_18] : memref<2x128xf32, #tpu.memory_space<vmem>>, vector<2x128xf32>
    tpu.vector_store %arg5[%c0_17, %c0_18], %53 {strides = array<i32>} : memref<2x128xf32, #tpu.memory_space<vmem>>, vector<2x128xf32>,
    %c0_19 = arith.constant 0 : index
    %c0_20 = arith.constant 0 : index
    %55 = vector.load %arg6[%c0_19, %c0_20] : memref<2x128xf32, #tpu.memory_space<vmem>>, vector<2x128xf32>
    %56 = arith.addf %55, %51 : vector<2x128xf32>
    %c0_21 = arith.constant 0 : index
    %c0_22 = arith.constant 0 : index
    %57 = vector.load %arg6[%c0_21, %c0_22] : memref<2x128xf32, #tpu.memory_space<vmem>>, vector<2x128xf32>
    tpu.vector_store %arg6[%c0_21, %c0_22], %56 {strides = array<i32>} : memref<2x128xf32, #tpu.memory_space<vmem>>, vector<2x128xf32>,
    %c6_i32_23 = arith.constant 6 : i32
    %58 = arith.cmpi sge, %arg1, %c6_i32_23 : i32
    %59 = arith.extui %58 : i1 to i32
    %c0_i32_24 = arith.constant 0 : i32
    %60 = arith.cmpi ne, %59, %c0_i32_24 : i32
    scf.if %60 {
      %c1 = arith.constant 1 : index
      %64 = memref.load %arg7[%c1] : memref<2xf32, #tpu.memory_space<smem>>
      %65 = arith.mulf %30, %51 : vector<2x128xf32>
      %66 = vector.shape_cast %65 : vector<2x128xf32> to vector<1x2x128xf32>
      %cst_26 = arith.constant dense<0.000000e+00> : vector<1xf32>
      %67 = vector.multi_reduction <add>, %66, %cst_26 [1, 2] : vector<1x2x128xf32> to vector<1xf32>
      %68 = vector.shape_cast %67 : vector<1xf32> to vector<1x1x1xf32>
      %69 = vector.extract %68[0, 0, 0] : f32 from vector<1x1x1xf32>
      %70 = arith.addf %64, %69 : f32
      %c1_27 = arith.constant 1 : index
      %71 = memref.load %arg7[%c1_27] : memref<2xf32, #tpu.memory_space<smem>>
      memref.store %70, %arg7[%c1_27] : memref<2xf32, #tpu.memory_space<smem>>
    } else {
    }
    %c7_i32 = arith.constant 7 : i32
    %61 = arith.cmpi eq, %arg1, %c7_i32 : i32
    %62 = arith.extui %61 : i1 to i32
    %c0_i32_25 = arith.constant 0 : i32
    %63 = arith.cmpi ne, %62, %c0_i32_25 : i32
    scf.if %63 {
      %c0_26 = arith.constant 0 : index
      %c0_27 = arith.constant 0 : index
      %64 = vector.load %arg5[%c0_26, %c0_27] : memref<2x128xf32, #tpu.memory_space<vmem>>, vector<2x128xf32>
      %c0_28 = arith.constant 0 : index
      %c0_29 = arith.constant 0 : index
      %65 = vector.load %arg6[%c0_28, %c0_29] : memref<2x128xf32, #tpu.memory_space<vmem>>, vector<2x128xf32>
      %66 = arith.mulf %64, %65 : vector<2x128xf32>
      %67 = vector.shape_cast %66 : vector<2x128xf32> to vector<1x2x128xf32>
      %cst_30 = arith.constant dense<0.000000e+00> : vector<1xf32>
      %68 = vector.multi_reduction <add>, %67, %cst_30 [1, 2] : vector<1x2x128xf32> to vector<1xf32>
      %69 = vector.shape_cast %68 : vector<1xf32> to vector<1x1x1xf32>
      %70 = vector.extract %69[0, 0, 0] : f32 from vector<1x1x1xf32>
      %c0_31 = arith.constant 0 : index
      %71 = memref.load %arg7[%c0_31] : memref<2xf32, #tpu.memory_space<smem>>
      %72 = arith.subf %70, %71 : f32
      %c1 = arith.constant 1 : index
      %73 = memref.load %arg7[%c1] : memref<2xf32, #tpu.memory_space<smem>>
      %74 = arith.subf %72, %73 : f32
      %cst_32 = arith.constant 0.000000e+00 : f32
      %75 = arith.subf %cst_32, %74 : f32
      %cst_33 = arith.constant 5.000000e-01 : f32
      %76 = arith.mulf %75, %cst_33 : f32
      %77 = vector.broadcast %76 : f32 to vector<8x128xf32>
      %c0_34 = arith.constant 0 : index
      %c0_35 = arith.constant 0 : index
      %c0_36 = arith.constant 0 : index
      %78 = vector.load %arg4[%c0_34, %c0_35, %c0_36] : memref<1x8x128xf32, #tpu.memory_space<vmem>>, vector<1x8x128xf32>
      %79 = vector.shape_cast %78 : vector<1x8x128xf32> to vector<8x128xf32>
      %80 = vector.shape_cast %77 : vector<8x128xf32> to vector<1x8x128xf32>
      tpu.vector_store %arg4[%c0_34, %c0_35, %c0_36], %80 {strides = array<i32>} : memref<1x8x128xf32, #tpu.memory_space<vmem>>, vector<1x8x128xf32>,
    } else {
    }
    return
  }
  func.func @transform_0(%arg0: i32, %arg1: i32) -> i32 {
    %c0_i32 = arith.constant 0 : i32
    %c0_i32_0 = arith.constant 0 : i32
    return %c0_i32 : i32
  }
  func.func @transform_1(%arg0: i32, %arg1: i32) -> (i32, i32, i32, i32) {
    %c2_i32 = arith.constant 2 : i32
    %0 = arith.addi %arg1, %c2_i32 : i32
    %c8_i32 = arith.constant 8 : i32
    %c0_i32 = arith.constant 0 : i32
    %1 = arith.cmpi eq, %c8_i32, %c0_i32 : i32
    %c1_i32 = arith.constant 1 : i32
    %2 = arith.select %1, %c1_i32, %c8_i32 : i32
    %3 = arith.remsi %0, %2 : i32
    %c0_i32_0 = arith.constant 0 : i32
    %4 = arith.cmpi ne, %3, %c0_i32_0 : i32
    %c0_i32_1 = arith.constant 0 : i32
    %5 = arith.cmpi slt, %3, %c0_i32_1 : i32
    %c0_i32_2 = arith.constant 0 : i32
    %6 = arith.cmpi slt, %2, %c0_i32_2 : i32
    %7 = arith.xori %5, %6 : i1
    %8 = arith.andi %7, %4 : i1
    %9 = arith.addi %3, %2 : i32
    %10 = arith.select %8, %9, %3 : i32
    %c0_i32_3 = arith.constant 0 : i32
    %c0_i32_4 = arith.constant 0 : i32
    %c0_i32_5 = arith.constant 0 : i32
    return %arg0, %10, %c0_i32_3, %c0_i32_4 : i32, i32, i32, i32
  }
  func.func @transform_2(%arg0: i32, %arg1: i32) -> (i32, i32, i32) {
    %c0_i32 = arith.constant 0 : i32
    %c0_i32_0 = arith.constant 0 : i32
    %c0_i32_1 = arith.constant 0 : i32
    return %arg0, %c0_i32, %c0_i32_0 : i32, i32, i32
  }
}

</mosaic_0001>

<llo_original>
// kernel: tpu_custom_call.1
$region0: #{tpu_custom_call.1}
  #allocation0 [shape = 'u32[]', space=smem, size = 0x4, offset = 0x4, fixed_abs, tag = 'smem constant byte address 0x4 - core index']
  #allocation1 [shape = 'u32[144,128]{1,0:T(1,128)}', space=vmem, size = 0x12000, scoped, tag = 'internal scratch']
  #allocation2 [shape = 'f32[2,128]{1,0:T(2,128)}', space=vmem, size = 0x400, scoped, tag = 'scratch operand']
  #allocation3 [shape = 'f32[2,128]{1,0:T(2,128)}', space=vmem, size = 0x400, scoped, tag = 'scratch operand']
  #allocation4 [shape = 'f32[2]{0:T(128)}', space=smem, size = 0x200, scoped, tag = 'scratch operand']
  %s0 = inlined_call_operand.hbm [shape: f32[2], index: 0, kind: input, shape index: {}]
  %s1 = inlined_call_operand.hbm [shape: f32[2,8,2,128], index: 1, kind: input, shape index: {}]
  %s2 = inlined_call_operand.hbm [shape: f32[2,8,128], index: 2, kind: output, shape index: {}]
  %s3 = sld [smem:[#allocation0]]
  $region65: #{tpu_custom_call.1} parent=0
    _
  %s5 = ssub.s32 1, %s3
  %s6 = scalar_select 0, %s5, %s3
  $region1: #{tpu_custom_call.1} parent=0
    #allocation5 [shape = 'u8[512]{0}', space=smem, size = 0x200, scoped, tag = 'input window, operand 0, single buffered']
    #allocation6 [shape = 's32[2]{0}', space=sflag, size = 0x8, scoped, tag = 'scoped memory for tpu_custom_call.1']
    #allocation7 [shape = 's32[2]{0}', space=sflag, size = 0x8, scoped, tag = 'scoped memory for tpu_custom_call.1']
    #allocation8 [shape = 's32[2]{0}', space=sflag, size = 0x8, scoped, tag = 'scoped memory for tpu_custom_call.1']
    #allocation9 [shape = 'u8[2048]{0}', space=vmem, size = 0x800, scoped, tag = 'input window, operand 1']
    #allocation10 [shape = 'u8[8192]{0}', space=vmem, size = 0x2000, scoped, tag = 'output window, operand 0']
    %7 = vsyncpa [#allocation8], 0
    %8 = vsyncpa [#allocation6], 0
    %s9 = scalar_lea.sflag [#allocation6], 1
    %10 = vsyncpa %s9, 0
    %11 = vsyncpa [#allocation7], 0
    %s12 = scalar_lea.sflag [#allocation7], 1
    %13 = vsyncpa %s12, 0
    loop: start=0, step=1, limit=18
    $region2: #{tpu_custom_call.1} parent=1 // loop_pre_header
      _
    $region3: #{tpu_custom_call.1} parent=1 // loop_header
      %s15 = sphi 0, %s19
      %p16 = scmp.ge.s32.totalorder %s15, 18
      %s22 = sphi 0, %s34
      %s23 = sphi 0, %s30
      %s24 = sphi 0, %s22
      %s25 = sphi 0, %s23
      %s26 = sphi 0, %s24
      %s27 = sphi 0, %s25
      %s35 = sphi 0, %s35
      %s37 = sphi 0, %s35
      %s38 = sphi 0, %s37
      %s52 = sphi 0, %s38
      %s86 = sphi 0, %s88
      %s89 = sphi 0, %s86
      %s90 = sphi 0, %s89
      %s106 = sphi 0, %s90
      %s112 = sphi 0, %s114
      %s115 = sphi 0, %s112
      %s116 = sphi 0, %s115
      %s132 = sphi 0, %s116
    $region4: #{tpu_custom_call.1} parent=1 // loop_header_branch
      %18 = sbr.rel (%p16) target = $region8
    $region5: #{tpu_custom_call.1} parent=1 // loop_body
      %s20 = ssub.s32 %s15, 1
      %s21 = ssub.s32 %s15, 2
      %s28 = sadd.s32 1, %s23
      %p29 = scmp.ge.s32.totalorder %s28, 8
      %s30 = scalar_select %p29, 0, %s28
      %s31 = sadd.s32 1, %s22
      %s32 = scalar_select %p29, %s31, %s22
      %p33 = scmp.ge.s32.totalorder %s32, 2
      %s34 = scalar_select %p33, 0, %s32
      %s36 = sadd.s32 %s35, 1
      %p39 = scmp.eq.s32.totalorder %s15, 15
      %p40 = scmp.ne.s32.totalorder %s35, %s37
      %p41 = scmp.eq.s32.totalorder %s15, 0
      %p42 = por %p40, %p41
      %p43 = scmp.ne.s32.totalorder %s35, %s37
      %p44 = scmp.eq.s32.totalorder %s20, 15
      %p45 = por %p43, %p44
      %p46 = scmp.ne.s32.totalorder %s37, %s38
      %p47 = scmp.eq.s32.totalorder %s20, 0
      %p48 = por %p46, %p47
      %p49 = scmp.ne.s32.totalorder %s37, %s38
      %p50 = scmp.eq.s32.totalorder %s21, 15
      %p51 = por %p49, %p50
      %p53 = scmp.ne.s32.totalorder %s38, %s52
      %p54 = scmp.eq.s32.totalorder %s21, 0
      %p55 = por %p53, %p54
      %s56 = sadd.s32 %s23, 2
      %p57 = scmp.lt.s32.totalorder %s56, 0
      %s58 = ssub.s32 0, %s56
      %s59 = scalar_select %p57, %s58, %s56
      %s60 = sand.u32 %s59, 7
      %s61 = ssub.s32 0, %s60
      %s62 = scalar_select %p57, %s61, %s60
      %p63 = scmp.ne.s32.totalorder %s62, 0
      %p64 = scmp.lt.s32.totalorder %s62, 0
      %p65 = pnand %p64, %p63
      %p66 = pneg %p65
      %s67 = sadd.s32 %s62, 8
      %s68 = scalar_select %p66, %s67, %s62
      %s69 = sadd.s32 %s30, 2
      %p70 = scmp.lt.s32.totalorder %s69, 0
      %s71 = ssub.s32 0, %s69
      %s72 = scalar_select %p70, %s71, %s69
      %s73 = sand.u32 %s72, 7
      %s74 = ssub.s32 0, %s73
      %s75 = scalar_select %p70, %s74, %s73
      %p76 = scmp.ne.s32.totalorder %s75, 0
      %p77 = scmp.lt.s32.totalorder %s75, 0
      %p78 = pnand %p77, %p76
      %p79 = pneg %p78
      %s80 = sadd.s32 %s75, 8
      %s81 = scalar_select %p79, %s80, %s75
      %s82 = ssub.s32 %s22, %s34
      %s83 = ssub.s32 %s68, %s81
      %s84 = sor.u32 %s82, %s83
      %p85 = scmp.eq.s32.totalorder %s84, 0
      %s87 = sadd.s32 %s86, 1
      %s88 = scalar_select %p85, %s86, %s87
      %p91 = pneg %p85
      %p92 = scmp.eq.s32.totalorder %s15, 15
      %p93 = por %p91, %p92
      %p94 = scmp.ne.s32.totalorder %s86, %s89
      %p95 = scmp.eq.s32.totalorder %s15, 0
      %p96 = por %p94, %p95
      %p97 = scmp.ne.s32.totalorder %s86, %s89
      %p98 = scmp.eq.s32.totalorder %s20, 15
      %p99 = por %p97, %p98
      %p100 = scmp.ne.s32.totalorder %s89, %s90
      %p101 = scmp.eq.s32.totalorder %s20, 0
      %p102 = por %p100, %p101
      %p103 = scmp.ne.s32.totalorder %s89, %s90
      %p104 = scmp.eq.s32.totalorder %s21, 15
      %p105 = por %p103, %p104
      %p107 = scmp.ne.s32.totalorder %s90, %s106
      %p108 = scmp.eq.s32.totalorder %s21, 0
      %p109 = por %p107, %p108
      %s110 = ssub.s32 %s22, %s34
      %p111 = scmp.eq.s32.totalorder %s110, 0
      %s113 = sadd.s32 %s112, 1
      %s114 = scalar_select %p111, %s112, %s113
      %p117 = pneg %p111
      %p118 = scmp.eq.s32.totalorder %s15, 15
      %p119 = por %p117, %p118
      %p120 = scmp.ne.s32.totalorder %s112, %s115
      %p121 = scmp.eq.s32.totalorder %s15, 0
      %p122 = por %p120, %p121
      %p123 = scmp.ne.s32.totalorder %s112, %s115
      %p124 = scmp.eq.s32.totalorder %s20, 15
      %p125 = por %p123, %p124
      %p126 = scmp.ne.s32.totalorder %s115, %s116
      %p127 = scmp.eq.s32.totalorder %s20, 0
      %p128 = por %p126, %p127
      %p129 = scmp.ne.s32.totalorder %s115, %s116
      %p130 = scmp.eq.s32.totalorder %s21, 15
      %p131 = por %p129, %p130
      %p133 = scmp.ne.s32.totalorder %s116, %s132
      %p134 = scmp.eq.s32.totalorder %s21, 0
      %p135 = por %p133, %p134
      %p136 = scmp.le.s32.totalorder 1, %s15
      %p137 = scmp.lt.s32.totalorder %s15, 17
      %p138 = pnand %p136, %p137
      %p139 = pneg %p138
      // Predicated region
      $region9: #{tpu_custom_call.1} parent=5 // pred_check
        _
      $region10: #{tpu_custom_call.1} parent=5 // pred_check_branch
        %141 = sbr.rel (%p138) target = $region12
      $region11: #{tpu_custom_call.1} parent=5 // pred_region
        %s142 = ssub.s32 %s15, 1
        // Predicated region
        $region13: #{tpu_custom_call.1} parent=11 // pred_check
          %p143 = pneg %p48
        $region14: #{tpu_custom_call.1} parent=11 // pred_check_branch
          %145 = sbr.rel (%p143) target = $region16
        $region15: #{tpu_custom_call.1} parent=11 // pred_region
          %s147 = ssub.s32 16, 16
          %148 = vsyncadd [#allocation8], %s147
          %151 = dma.hbm_to_smem %s0, 16, [#allocation5], [#allocation8]
        $region16: #{tpu_custom_call.1} parent=11 // pred_fallthru
          _
      $region12: #{tpu_custom_call.1} parent=5 // pred_fallthru
        _
      %p152 = scmp.lt.s32.totalorder %s15, 16
      // Predicated region
      $region17: #{tpu_custom_call.1} parent=5 // pred_check
        %p153 = pneg %p152
      $region18: #{tpu_custom_call.1} parent=5 // pred_check_branch
        %155 = sbr.rel (%p153) target = $region20
      $region19: #{tpu_custom_call.1} parent=5 // pred_region
        // Predicated region
        $region21: #{tpu_custom_call.1} parent=19 // pred_check
          %p156 = pneg %p96
        $region22: #{tpu_custom_call.1} parent=19 // pred_check_branch
          %158 = sbr.rel (%p156) target = $region24
        $region23: #{tpu_custom_call.1} parent=19 // pred_region
          %s159 = sand.u32 %s86, 1
          %s160 = scalar_lea.sflag [#allocation6], %s159
          %s161 = sand.u32 %s86, 1
          %s162 = smul.addr %s161, 2
          %s163 = scalar_lea.vmem [#allocation9], %s162
          %s164 = sadd.s32 %s23, 2
          %p165 = scmp.lt.s32.totalorder %s164, 0
          %s166 = ssub.s32 0, %s164
          %s167 = scalar_select %p165, %s166, %s164
          %s168 = sand.u32 %s167, 7
          %s169 = ssub.s32 0, %s168
          %s170 = scalar_select %p165, %s169, %s168
          %p171 = scmp.ne.s32.totalorder %s170, 0
          %p172 = scmp.lt.s32.totalorder %s170, 0
          %p173 = pnand %p172, %p171
          %p174 = pneg %p173
          %s175 = sadd.s32 %s170, 8
          %s176 = scalar_select %p174, %s175, %s170
          %s178 = ssub.s32 32, 32
          %179 = vsyncadd %s160, %s178
          %s180 = smul.addr %s22, 8
          %s181 = sadd.s32 %s176, %s180
          %s182 = smul.addr %s181, 32
          %s183 = scalar_lea.hbm %s1, %s182
          %s185 = sshll.u32 %s163, 4
          %s186 = int_to_ptr.vmem [resolvable:$true] %s185
          %188 = dma.hbm_to_vmem [thread:$0]  %s183, 32, %s186, %s160
        $region24: #{tpu_custom_call.1} parent=19 // pred_fallthru
          _
      $region20: #{tpu_custom_call.1} parent=5 // pred_fallthru
        _
      %p189 = scmp.le.s32.totalorder 1, %s15
      %p190 = scmp.lt.s32.totalorder %s15, 17
      %p191 = pnand %p189, %p190
      %p192 = pneg %p191
      // Predicated region
      $region25: #{tpu_custom_call.1} parent=5 // pred_check
        _
      $region26: #{tpu_custom_call.1} parent=5 // pred_check_branch
        %194 = sbr.rel (%p191) target = $region28
      $region27: #{tpu_custom_call.1} parent=5 // pred_region
        %s195 = ssub.s32 %s15, 1
        // Predicated region
        $region29: #{tpu_custom_call.1} parent=27 // pred_check
          %p196 = pneg %p48
        $region30: #{tpu_custom_call.1} parent=27 // pred_check_branch
          %198 = sbr.rel (%p196) target = $region32
        $region31: #{tpu_custom_call.1} parent=27 // pred_region
          %199 = dma.done [#allocation8], 16
        $region32: #{tpu_custom_call.1} parent=27 // pred_fallthru
          _
        %s200 = sand.u32 %s89, 1
        %s201 = scalar_lea.sflag [#allocation6], %s200
        %s202 = sand.u32 %s89, 1
        %s203 = smul.addr %s202, 2
        %s204 = scalar_lea.vmem [#allocation9], %s203
        // Predicated region
        $region33: #{tpu_custom_call.1} parent=27 // pred_check
          %p205 = pneg %p102
        $region34: #{tpu_custom_call.1} parent=27 // pred_check_branch
          %207 = sbr.rel (%p205) target = $region36
        $region35: #{tpu_custom_call.1} parent=27 // pred_region
          %208 = dma.done %s201, 32
        $region36: #{tpu_custom_call.1} parent=27 // pred_fallthru
          _
        %209 = sfence
        %p210 = pneg %p48
        %p211 = pneg %p45
        %s212 = sand.u32 %s89, 1
        %s213 = scalar_lea.sflag [#allocation6], %s212
        %s214 = sand.u32 %s89, 1
        %s215 = smul.addr %s214, 2
        %s216 = scalar_lea.vmem [#allocation9], %s215
        %p217 = pneg %p102
        %p218 = pneg %p99
        %p219 = pneg %p128
        %p220 = pneg %p125
        %s221 = sand.u32 %s115, 1
        %s222 = scalar_lea.sflag [#allocation7], %s221
        %s223 = sand.u32 %s115, 1
        %s224 = smul.addr %s223, 8
        %s225 = scalar_lea.vmem [#allocation10], %s224
        %s226 = sadd.s32 %s25, 2
        %p227 = scmp.lt.s32.totalorder %s226, 0
        %s228 = ssub.s32 0, %s226
        %s229 = scalar_select %p227, %s228, %s226
        %s230 = sand.u32 %s229, 7
        %s231 = ssub.s32 0, %s230
        %s232 = scalar_select %p227, %s231, %s230
        %p233 = scmp.ne.s32.totalorder %s232, 0
        %p234 = scmp.lt.s32.totalorder %s232, 0
        %p235 = pnand %p234, %p233
        %p236 = pneg %p235
        %s237 = sadd.s32 %s232, 8
        %s238 = scalar_select %p236, %s237, %s232
        %p239 = scmp.eq.s32.totalorder %s25, 0
        // Predicated region
        $region37: #{tpu_custom_call.1} parent=27 // pred_check
          %p240 = pneg %p239
        $region38: #{tpu_custom_call.1} parent=27 // pred_check_branch
          %242 = sbr.rel (%p240) target = $region40
        $region39: #{tpu_custom_call.1} parent=27 // pred_region
          %243 = vst [vmem:[#allocation2] sm:$0x3] 0.0
          %244 = vst [vmem:[#allocation3] sm:$0x3] 0.0
          %s245 = scalar_lea.smem [#allocation4], 0
          %246 = sst [smem:[%s245]] 0.0
          %s247 = scalar_lea.smem [#allocation4], 1
          %248 = sst [smem:[%s247]] 0.0
        $region40: #{tpu_custom_call.1} parent=27 // pred_fallthru
          _
        %p249 = scmp.eq.s32.totalorder %s25, 6
        // Predicated region
        $region41: #{tpu_custom_call.1} parent=27 // pred_check
          %p250 = pneg %p249
        $region42: #{tpu_custom_call.1} parent=27 // pred_check_branch
          %252 = sbr.rel (%p250) target = $region44
        $region43: #{tpu_custom_call.1} parent=27 // pred_region
          %v253 = vld [vmem:[#allocation2] sm:$0x3]
          %v254 = vld [vmem:[#allocation3] sm:$0x3]
          %v255 = vmul.f32 %v253, %v254
          %vm256 = vcmask 1041408
          %v257 = vsel %vm256, %v255, 0.0
          %258 = vadd.xlane.f32.xlu0 %v257
          %v259 = vpop.xlane.xlu0 %258
          %v260 = vrot.slane %v259, 4
          %v261 = vadd.f32 %v259, %v260
          %v262 = vrot.slane %v261, 2
          %v263 = vadd.f32 %v261, %v262
          %v264 = vrot.slane %v263, 1
          %v265 = vadd.f32 %v263, %v264
          %s266 = vtos %v265
          %s267 = scalar_lea.smem [#allocation4], 0
          %268 = sst [smem:[%s267]] %s266
        $region44: #{tpu_custom_call.1} parent=27 // pred_fallthru
          _
        %v269 = vld [vmem:[%s204] sm:$0x3]
        %v270 = vmul.f32 %v269, 10.0
        %vm271 = vcmask 1041408
        %v272 = vsel %vm271, %v270, -inf
        %273 = vmax.xlane.f32.xlu0 %v272
        %v274 = vpop.xlane.xlu0 %273
        %v275 = vrot.slane %v274, 4
        %v276 = vmax.f32 %v274, %v275
        %v277 = vrot.slane %v276, 2
        %v278 = vmax.f32 %v276, %v277
        %v279 = vrot.slane %v278, 1
        %v280 = vmax.f32 %v278, %v279
        %s281 = vtos %v280
        %v282 = vstv %s281
        %v283 = vsub.f32 %v270, %v282
        %v284 = vmul.f32 %v283, 1.442695
        %v285 = vpow.pop %v284
        %v286 = vsel %vm271, %v285, 0.0
        %v287 = vrot.slane %v286, 4
        %v288 = vadd.f32 %v286, %v287
        %v289 = vrot.slane %v288, 2
        %v290 = vadd.f32 %v288, %v289
        %v291 = vrot.slane %v290, 1
        %v292 = vadd.f32 %v290, %v291
        %v293 = vmax.f32 %v292, 1e-37
        %v294 = vrcp.pop %v293
        %v295 = vmul.f32 %v285, %v294
        %v296 = vsel %vm271, %v295, 0.0
        %297 = vadd.xlane.f32.xlu0 %v296
        %v298 = vpop.xlane.xlu0 %297
        %v299 = vmax.f32 %v298, 1e-08
        %v300 = vrcp.pop %v299
        %v301 = vmul.f32 %v295, %v300
        %302 = vadd.xlane.f32.xlu0 %v286
        %v303 = vpop.xlane.xlu0 %302
        %v304 = vmax.f32 %v303, 1e-37
        %v305 = vrcp.pop %v304
        %v306 = vmul.f32 %v285, %v305
        %v307 = vsel %vm271, %v306, 0.0
        %v308 = vrot.slane %v307, 4
        %v309 = vadd.f32 %v307, %v308
        %v310 = vrot.slane %v309, 2
        %v311 = vadd.f32 %v309, %v310
        %v312 = vrot.slane %v311, 1
        %v313 = vadd.f32 %v311, %v312
        %v314 = vmax.f32 %v313, 1e-08
        %v315 = vrcp.pop %v314
        %v316 = vmul.f32 %v306, %v315
        %s317 = sld [smem:[#allocation5 + %s24]]
        %v318 = vstv %s317
        %v319 = vmul.f32 %v318, %v316
        %v320 = vadd.f32 %v319, 1e-08
        %v321 = vlog2.pop %v320
        %v322 = vmul.f32 %v321, 0.6931472
        %v323 = vld [vmem:[#allocation2] sm:$0x3]
        %v324 = vadd.f32 %v323, %v301
        %325 = vst [vmem:[#allocation2] sm:$0x3] %v324
        %v326 = vld [vmem:[#allocation3] sm:$0x3]
        %v327 = vadd.f32 %v326, %v322
        %328 = vst [vmem:[#allocation3] sm:$0x3] %v327
        %p329 = scmp.ge.s32.totalorder %s25, 6
        // Predicated region
        $region45: #{tpu_custom_call.1} parent=27 // pred_check
          %p330 = pneg %p329
        $region46: #{tpu_custom_call.1} parent=27 // pred_check_branch
          %332 = sbr.rel (%p330) target = $region48
        $region47: #{tpu_custom_call.1} parent=27 // pred_region
          %s333 = sld [smem:[#allocation4 + $0x1]]
          %v334 = vmul.f32 %v301, %v322
          %v335 = vsel %vm271, %v334, 0.0
          %336 = vadd.xlane.f32.xlu0 %v335
          %v337 = vpop.xlane.xlu0 %336
          %v338 = vrot.slane %v337, 4
          %v339 = vadd.f32 %v337, %v338
          %v340 = vrot.slane %v339, 2
          %v341 = vadd.f32 %v339, %v340
          %v342 = vrot.slane %v341, 1
          %v343 = vadd.f32 %v341, %v342
          %s344 = vtos %v343
          %s345 = sadd.f32 %s333, %s344
          %s346 = scalar_lea.smem [#allocation4], 1
          %347 = sst [smem:[%s346]] %s345
        $region48: #{tpu_custom_call.1} parent=27 // pred_fallthru
          _
        %p348 = scmp.eq.s32.totalorder %s25, 7
        // Predicated region
        $region49: #{tpu_custom_call.1} parent=27 // pred_check
          %p349 = pneg %p348
        $region50: #{tpu_custom_call.1} parent=27 // pred_check_branch
          %351 = sbr.rel (%p349) target = $region52
        $region51: #{tpu_custom_call.1} parent=27 // pred_region
          %v352 = vld [vmem:[#allocation2] sm:$0x3]
          %v353 = vld [vmem:[#allocation3] sm:$0x3]
          %v354 = vmul.f32 %v352, %v353
          %v355 = vsel %vm271, %v354, 0.0
          %356 = vadd.xlane.f32.xlu0 %v355
          %v357 = vpop.xlane.xlu0 %356
          %v358 = vrot.slane %v357, 4
          %v359 = vadd.f32 %v357, %v358
          %v360 = vrot.slane %v359, 2
          %v361 = vadd.f32 %v359, %v360
          %v362 = vrot.slane %v361, 1
          %v363 = vadd.f32 %v361, %v362
          %s364 = vtos %v363
          %s365 = sld [smem:[#allocation4]]
          %s366 = ssub.f32 %s364, %s365
          %s367 = sld [smem:[#allocation4 + $0x1]]
          %s368 = ssub.f32 %s366, %s367
          %s369 = ssub.f32 0.0, %s368
          %s370 = smul.f32 %s369, 0.5
          %v371 = vstv %s370
          %372 = vst [vmem:[%s225] sm:$0xff] %v371
        $region52: #{tpu_custom_call.1} parent=27 // pred_fallthru
          _
        %s373 = sand.u32 %s115, 1
        %s374 = scalar_lea.sflag [#allocation7], %s373
        %s375 = sand.u32 %s115, 1
        %s376 = smul.addr %s375, 8
        %s377 = scalar_lea.vmem [#allocation10], %s376
        // Predicated region
        $region53: #{tpu_custom_call.1} parent=27 // pred_check
          %p378 = pneg %p125
        $region54: #{tpu_custom_call.1} parent=27 // pred_check_branch
          %380 = sbr.rel (%p378) target = $region56
        $region55: #{tpu_custom_call.1} parent=27 // pred_region
          %s382 = ssub.s32 128, 128
          %383 = vsyncadd %s374, %s382
          %s384 = smul.addr %s24, 128
          %s385 = scalar_lea.hbm %s2, %s384
          %s387 = sshll.u32 %s377, 4
          %s388 = int_to_ptr.vmem [resolvable:$true] %s387
          %390 = dma.vmem_to_hbm [thread:$0]  %s388, 128, %s385, %s374
        $region56: #{tpu_custom_call.1} parent=27 // pred_fallthru
          _
      $region28: #{tpu_custom_call.1} parent=5 // pred_fallthru
        _
      %p391 = scmp.le.s32.totalorder 2, %s15
      // Predicated region
      $region57: #{tpu_custom_call.1} parent=5 // pred_check
        %p392 = pneg %p391
      $region58: #{tpu_custom_call.1} parent=5 // pred_check_branch
        %394 = sbr.rel (%p392) target = $region60
      $region59: #{tpu_custom_call.1} parent=5 // pred_region
        %s395 = ssub.s32 %s15, 2
        // Predicated region
        $region61: #{tpu_custom_call.1} parent=59 // pred_check
          %p396 = pneg %p131
        $region62: #{tpu_custom_call.1} parent=59 // pred_check_branch
          %398 = sbr.rel (%p396) target = $region64
        $region63: #{tpu_custom_call.1} parent=59 // pred_region
          %s399 = sand.u32 %s116, 1
          %s400 = scalar_lea.sflag [#allocation7], %s399
          %s401 = sand.u32 %s116, 1
          %s402 = smul.addr %s401, 8
          %s403 = scalar_lea.vmem [#allocation10], %s402
          %404 = dma.done %s400, 128
        $region64: #{tpu_custom_call.1} parent=59 // pred_fallthru
          _
      $region60: #{tpu_custom_call.1} parent=5 // pred_fallthru
        _
    $region6: #{tpu_custom_call.1} parent=1 // loop_footer
      %s19 = sadd.s32 1, %s15
    $region7: #{tpu_custom_call.1} parent=1 // loop_footer_branch
      %14 = sbr.rel target = $region3
    $region8: #{tpu_custom_call.1} parent=1 // loop_exit
      _
    %405 = vsyncpa [#allocation6], 1
    %s406 = scalar_lea.sflag [#allocation6], 1
    %407 = vsyncpa %s406, 1
    %408 = vsyncpa [#allocation7], 1
    %s409 = scalar_lea.sflag [#allocation7], 1
    %410 = vsyncpa %s409, 1
    %411 = vsyncpa [#allocation8], 1
    %s412 = scalar_lea.sflag [#allocation8], 1
    %413 = vsyncpa %s412, 1

</llo_original>
